<compile_context>
chip_gen: v5e
topology: v5e:2x2
jax: 0.10.0
libtpu: 0.0.40
codegen_flags: <defaults>
</compile_context>

<pallas_src>
import functools

import jax
import jax.numpy as jnp
from jax import lax
from jax.experimental import pallas as pl
from jax.experimental.pallas import tpu as pltpu

_LANES = 128
_TILE_BYTES = 2 * 1024 * 1024   # per-input-tile byte budget (double-buffered by Pallas)


# ---------------------------------------------------------------------------
# Kernels
# ---------------------------------------------------------------------------
def _reduce_bases(x_f32, w_f32, B, C, P):
    """x_f32: (TG, P*B*C), w_f32: (1, B*C).

    Returns a list of P arrays of shape (TG, C):
      parts[p][g, c] = sum_b x_f32[g, p*B*C + b*C + c] * w_f32[0, b*C + c]
    i.e. the per-original-row weighted sum over nbases, for packed slot p.
    """
    parts = []
    for p in range(P):
        base = p * B * C
        acc = x_f32[:, base:base + C] * w_f32[:, 0:C]
        for b in range(1, B):
            acc = acc + (x_f32[:, base + b * C: base + (b + 1) * C]
                         * w_f32[:, b * C:(b + 1) * C])
        parts.append(acc)
    return parts


def _spec_kernel_none(x_ref, w_ref, o_ref, *, B, C, P):
    x = x_ref[...].astype(jnp.float32)
    w = w_ref[...].astype(jnp.float32)
    parts = _reduce_bases(x, w, B, C, P)
    for p, acc in enumerate(parts):
        o_ref[:, p * C:(p + 1) * C] = acc.astype(o_ref.dtype)


def _spec_kernel_layer(x_ref, w_ref, g_ref, b_ref, o_ref, *, B, C, P, eps):
    x = x_ref[...].astype(jnp.float32)
    w = w_ref[...].astype(jnp.float32)
    gamma = g_ref[...].astype(jnp.float32)
    beta = b_ref[...].astype(jnp.float32)
    parts = _reduce_bases(x, w, B, C, P)
    inv_c = 1.0 / float(C)
    for p, acc in enumerate(parts):
        # LayerNorm over the last dim (C lanes), single-pass stats, then ReLU.
        m = jnp.sum(acc, axis=-1, keepdims=True) * inv_c
        ms = jnp.sum(acc * acc, axis=-1, keepdims=True) * inv_c
        var = ms - m * m
        y = (acc - m) * lax.rsqrt(var + eps)
        y = y * gamma + beta
        y = jnp.maximum(y, 0.0)
        o_ref[:, p * C:(p + 1) * C] = y.astype(o_ref.dtype)


# ---------------------------------------------------------------------------
# Wrapper
# ---------------------------------------------------------------------------
def spec_layer(x, weight, gamma=None, beta=None, norm="none", eps=1e-5,
               tile_bytes=_TILE_BYTES):
    """Pallas implementation of SpecLayer.forward (eval mode, dropout p=0)."""
    N, B, C = x.shape
    assert weight.shape == (1, B, C)
    out_dtype = x.dtype

    # Pack P = 128 // C consecutive output rows into one 128-lane row when the
    # shapes allow it (free reshape on both ends); otherwise fall back to P=1.
    if C < _LANES and _LANES % C == 0:
        P = _LANES // C
        if N % P != 0:
            P = 1
    else:
        P = 1

    G = N // P                       # packed rows
    row_elems = P * B * C            # elements per packed input row
    # Contiguous (free) reshapes - no wrapper-side data movement.
    x2 = x.reshape(G, row_elems)
    w2 = weight.reshape(1, B * C)

    # Tile the packed-row axis: multiple of 8 sublanes, sized to a byte budget
    # so double-buffered tiles fit every generation's default scoped VMEM.
    row_bytes = row_elems * x.dtype.itemsize
    tile_g = (tile_bytes // max(row_bytes, 1)) // 8 * 8
    tile_g = max(tile_g, 8)
    if tile_g >= G:
        tile_g = G
    grid = (pl.cdiv(G, tile_g),)

    x_spec = pl.BlockSpec((tile_g, row_elems), lambda i: (i, 0))
    w_spec = pl.BlockSpec((1, B * C), lambda i: (0, 0))
    out_spec = pl.BlockSpec((tile_g, P * C), lambda i: (i, 0))
    out_shape = jax.ShapeDtypeStruct((G, P * C), out_dtype)
    cparams = pltpu.CompilerParams(dimension_semantics=("parallel",))

    if norm == "none":
        y2 = pl.pallas_call(
            functools.partial(_spec_kernel_none, B=B, C=C, P=P),
            grid=grid,
            in_specs=[x_spec, w_spec],
            out_specs=out_spec,
            out_shape=out_shape,
            compiler_params=cparams,
        )(x2, w2)
    elif norm == "layer":
        assert gamma is not None and beta is not None
        g2 = gamma.reshape(1, C)
        b2 = beta.reshape(1, C)
        gb_spec = pl.BlockSpec((1, C), lambda i: (0, 0))
        y2 = pl.pallas_call(
            functools.partial(_spec_kernel_layer, B=B, C=C, P=P, eps=eps),
            grid=grid,
            in_specs=[x_spec, w_spec, gb_spec, gb_spec],
            out_specs=out_spec,
            out_shape=out_shape,
            compiler_params=cparams,
        )(x2, w2, g2, b2)
    else:
        # TODO(synk): norm == 'batch' (BatchNorm1d running stats) not implemented.
        raise NotImplementedError(f"norm={norm!r}")

    return y2.reshape(N, C)          # free reshape back to (N, C)


# Pure-JAX reference for correctness checking.
def spec_layer_ref(x, weight, gamma=None, beta=None, norm="none", eps=1e-5):
    y = jnp.sum(x.astype(jnp.float32) * weight.astype(jnp.float32), axis=1)
    if norm == "layer":
        mean = jnp.mean(y, axis=-1, keepdims=True)
        var = jnp.mean((y - mean) ** 2, axis=-1, keepdims=True)
        y = (y - mean) * lax.rsqrt(var + eps) * gamma + beta
        y = jnp.maximum(y, 0.0)
    return y.astype(x.dtype)


# ---------------------------------------------------------------------------
# Main
# ---------------------------------------------------------------------------
if __name__ == "__main__":
    key = jax.random.PRNGKey(0)
    k_x, k_w, k_x2 = jax.random.split(key, 3)

    N, nbases, ncombines = 8, 4, 32   # small shapes consistent with the module
    x = jax.random.normal(k_x, (N, nbases, ncombines), dtype=jnp.float32)

    # --- norm='none' variant: weight initialized to ones (as in __init__) ---
    w_none = jnp.ones((1, nbases, ncombines), dtype=jnp.float32)
    out_none = jax.block_until_ready(spec_layer(x, w_none, norm="none"))
    ref_none = spec_layer_ref(x, w_none, norm="none")
    assert out_none.shape == (N, ncombines)
    assert jnp.allclose(out_none, ref_none, atol=1e-5, rtol=1e-5)

    # --- norm='layer' variant: weight ~ N(0, 0.01), LayerNorm gamma=1, beta=0 ---
    w_layer = 0.01 * jax.random.normal(k_w, (1, nbases, ncombines), dtype=jnp.float32)
    gamma = jnp.ones((ncombines,), dtype=jnp.float32)
    beta = jnp.zeros((ncombines,), dtype=jnp.float32)
    out_layer = jax.block_until_ready(spec_layer(x, w_layer, gamma, beta, norm="layer"))
    ref_layer = spec_layer_ref(x, w_layer, gamma, beta, norm="layer")
    assert out_layer.shape == (N, ncombines)
    assert jnp.allclose(out_layer, ref_layer, atol=1e-5, rtol=1e-5)

    # --- multi-tile grid check (same op, more rows, small tile budget) ---
    xb = jax.random.normal(k_x2, (512, nbases, ncombines), dtype=jnp.float32)
    out_b = jax.block_until_ready(
        spec_layer(xb, w_layer, gamma, beta, norm="layer", tile_bytes=16 * 1024))
    ref_b = spec_layer_ref(xb, w_layer, gamma, beta, norm="layer")
    assert out_b.shape == (512, ncombines)
    assert jnp.allclose(out_b, ref_b, atol=1e-5, rtol=1e-5)

    print("KERNEL_OK")
</pallas_src>

<mosaic_0001>
module attributes {stable_mosaic.version = 11 : i64} {
  func.func @_spec_kernel_none(%arg0: i32, %arg1: memref<2x512xf32, #tpu.memory_space<vmem>>, %arg2: memref<1x128xf32, #tpu.memory_space<vmem>>, %arg3: memref<2x128xf32, #tpu.memory_space<vmem>>) attributes {dimension_semantics = [#tpu.dimension_semantics<parallel>], iteration_bounds = array<i64: 1>, scalar_prefetch = 0 : i64, scratch_operands = 0 : i64, tpu.core_type = #tpu.core_type<tc>, window_params = [{transform_indices = @transform_0, window_bounds = array<i64: 2, 512>}, {pipeline_mode = #tpu.pipeline_mode<synchronous>, transform_indices = @transform_1, window_bounds = array<i64: 1, 128>}, {transform_indices = @transform_2, window_bounds = array<i64: 2, 128>}]} {
    %c0 = arith.constant 0 : index
    %c0_0 = arith.constant 0 : index
    %0 = vector.load %arg1[%c0, %c0_0] : memref<2x512xf32, #tpu.memory_space<vmem>>, vector<2x512xf32>
    %c0_1 = arith.constant 0 : index
    %c0_2 = arith.constant 0 : index
    %1 = vector.load %arg2[%c0_1, %c0_2] : memref<1x128xf32, #tpu.memory_space<vmem>>, vector<1x128xf32>
    %2 = vector.extract_strided_slice %0 {offsets = [0, 0], sizes = [2, 32], strides = [1, 1]} : vector<2x512xf32> to vector<2x32xf32>
    %3 = vector.extract_strided_slice %1 {offsets = [0, 0], sizes = [1, 32], strides = [1, 1]} : vector<1x128xf32> to vector<1x32xf32>
    %4 = vector.broadcast %3 : vector<1x32xf32> to vector<2x32xf32>
    %5 = arith.mulf %2, %4 : vector<2x32xf32>
    %6 = vector.extract_strided_slice %0 {offsets = [0, 32], sizes = [2, 32], strides = [1, 1]} : vector<2x512xf32> to vector<2x32xf32>
    %7 = vector.extract_strided_slice %1 {offsets = [0, 32], sizes = [1, 32], strides = [1, 1]} : vector<1x128xf32> to vector<1x32xf32>
    %8 = vector.broadcast %7 : vector<1x32xf32> to vector<2x32xf32>
    %9 = arith.mulf %6, %8 : vector<2x32xf32>
    %10 = arith.addf %5, %9 : vector<2x32xf32>
    %11 = vector.extract_strided_slice %0 {offsets = [0, 64], sizes = [2, 32], strides = [1, 1]} : vector<2x512xf32> to vector<2x32xf32>
    %12 = vector.extract_strided_slice %1 {offsets = [0, 64], sizes = [1, 32], strides = [1, 1]} : vector<1x128xf32> to vector<1x32xf32>
    %13 = vector.broadcast %12 : vector<1x32xf32> to vector<2x32xf32>
    %14 = arith.mulf %11, %13 : vector<2x32xf32>
    %15 = arith.addf %10, %14 : vector<2x32xf32>
    %16 = vector.extract_strided_slice %0 {offsets = [0, 96], sizes = [2, 32], strides = [1, 1]} : vector<2x512xf32> to vector<2x32xf32>
    %17 = vector.extract_strided_slice %1 {offsets = [0, 96], sizes = [1, 32], strides = [1, 1]} : vector<1x128xf32> to vector<1x32xf32>
    %18 = vector.broadcast %17 : vector<1x32xf32> to vector<2x32xf32>
    %19 = arith.mulf %16, %18 : vector<2x32xf32>
    %20 = arith.addf %15, %19 : vector<2x32xf32>
    %21 = vector.extract_strided_slice %0 {offsets = [0, 128], sizes = [2, 32], strides = [1, 1]} : vector<2x512xf32> to vector<2x32xf32>
    %22 = vector.extract_strided_slice %1 {offsets = [0, 0], sizes = [1, 32], strides = [1, 1]} : vector<1x128xf32> to vector<1x32xf32>
    %23 = vector.broadcast %22 : vector<1x32xf32> to vector<2x32xf32>
    %24 = arith.mulf %21, %23 : vector<2x32xf32>
    %25 = vector.extract_strided_slice %0 {offsets = [0, 160], sizes = [2, 32], strides = [1, 1]} : vector<2x512xf32> to vector<2x32xf32>
    %26 = vector.extract_strided_slice %1 {offsets = [0, 32], sizes = [1, 32], strides = [1, 1]} : vector<1x128xf32> to vector<1x32xf32>
    %27 = vector.broadcast %26 : vector<1x32xf32> to vector<2x32xf32>
    %28 = arith.mulf %25, %27 : vector<2x32xf32>
    %29 = arith.addf %24, %28 : vector<2x32xf32>
    %30 = vector.extract_strided_slice %0 {offsets = [0, 192], sizes = [2, 32], strides = [1, 1]} : vector<2x512xf32> to vector<2x32xf32>
    %31 = vector.extract_strided_slice %1 {offsets = [0, 64], sizes = [1, 32], strides = [1, 1]} : vector<1x128xf32> to vector<1x32xf32>
    %32 = vector.broadcast %31 : vector<1x32xf32> to vector<2x32xf32>
    %33 = arith.mulf %30, %32 : vector<2x32xf32>
    %34 = arith.addf %29, %33 : vector<2x32xf32>
    %35 = vector.extract_strided_slice %0 {offsets = [0, 224], sizes = [2, 32], strides = [1, 1]} : vector<2x512xf32> to vector<2x32xf32>
    %36 = vector.extract_strided_slice %1 {offsets = [0, 96], sizes = [1, 32], strides = [1, 1]} : vector<1x128xf32> to vector<1x32xf32>
    %37 = vector.broadcast %36 : vector<1x32xf32> to vector<2x32xf32>
    %38 = arith.mulf %35, %37 : vector<2x32xf32>
    %39 = arith.addf %34, %38 : vector<2x32xf32>
    %40 = vector.extract_strided_slice %0 {offsets = [0, 256], sizes = [2, 32], strides = [1, 1]} : vector<2x512xf32> to vector<2x32xf32>
    %41 = vector.extract_strided_slice %1 {offsets = [0, 0], sizes = [1, 32], strides = [1, 1]} : vector<1x128xf32> to vector<1x32xf32>
    %42 = vector.broadcast %41 : vector<1x32xf32> to vector<2x32xf32>
    %43 = arith.mulf %40, %42 : vector<2x32xf32>
    %44 = vector.extract_strided_slice %0 {offsets = [0, 288], sizes = [2, 32], strides = [1, 1]} : vector<2x512xf32> to vector<2x32xf32>
    %45 = vector.extract_strided_slice %1 {offsets = [0, 32], sizes = [1, 32], strides = [1, 1]} : vector<1x128xf32> to vector<1x32xf32>
    %46 = vector.broadcast %45 : vector<1x32xf32> to vector<2x32xf32>
    %47 = arith.mulf %44, %46 : vector<2x32xf32>
    %48 = arith.addf %43, %47 : vector<2x32xf32>
    %49 = vector.extract_strided_slice %0 {offsets = [0, 320], sizes = [2, 32], strides = [1, 1]} : vector<2x512xf32> to vector<2x32xf32>
    %50 = vector.extract_strided_slice %1 {offsets = [0, 64], sizes = [1, 32], strides = [1, 1]} : vector<1x128xf32> to vector<1x32xf32>
    %51 = vector.broadcast %50 : vector<1x32xf32> to vector<2x32xf32>
    %52 = arith.mulf %49, %51 : vector<2x32xf32>
    %53 = arith.addf %48, %52 : vector<2x32xf32>
    %54 = vector.extract_strided_slice %0 {offsets = [0, 352], sizes = [2, 32], strides = [1, 1]} : vector<2x512xf32> to vector<2x32xf32>
    %55 = vector.extract_strided_slice %1 {offsets = [0, 96], sizes = [1, 32], strides = [1, 1]} : vector<1x128xf32> to vector<1x32xf32>
    %56 = vector.broadcast %55 : vector<1x32xf32> to vector<2x32xf32>
    %57 = arith.mulf %54, %56 : vector<2x32xf32>
    %58 = arith.addf %53, %57 : vector<2x32xf32>
    %59 = vector.extract_strided_slice %0 {offsets = [0, 384], sizes = [2, 32], strides = [1, 1]} : vector<2x512xf32> to vector<2x32xf32>
    %60 = vector.extract_strided_slice %1 {offsets = [0, 0], sizes = [1, 32], strides = [1, 1]} : vector<1x128xf32> to vector<1x32xf32>
    %61 = vector.broadcast %60 : vector<1x32xf32> to vector<2x32xf32>
    %62 = arith.mulf %59, %61 : vector<2x32xf32>
    %63 = vector.extract_strided_slice %0 {offsets = [0, 416], sizes = [2, 32], strides = [1, 1]} : vector<2x512xf32> to vector<2x32xf32>
    %64 = vector.extract_strided_slice %1 {offsets = [0, 32], sizes = [1, 32], strides = [1, 1]} : vector<1x128xf32> to vector<1x32xf32>
    %65 = vector.broadcast %64 : vector<1x32xf32> to vector<2x32xf32>
    %66 = arith.mulf %63, %65 : vector<2x32xf32>
    %67 = arith.addf %62, %66 : vector<2x32xf32>
    %68 = vector.extract_strided_slice %0 {offsets = [0, 448], sizes = [2, 32], strides = [1, 1]} : vector<2x512xf32> to vector<2x32xf32>
    %69 = vector.extract_strided_slice %1 {offsets = [0, 64], sizes = [1, 32], strides = [1, 1]} : vector<1x128xf32> to vector<1x32xf32>
    %70 = vector.broadcast %69 : vector<1x32xf32> to vector<2x32xf32>
    %71 = arith.mulf %68, %70 : vector<2x32xf32>
    %72 = arith.addf %67, %71 : vector<2x32xf32>
    %73 = vector.extract_strided_slice %0 {offsets = [0, 480], sizes = [2, 32], strides = [1, 1]} : vector<2x512xf32> to vector<2x32xf32>
    %74 = vector.extract_strided_slice %1 {offsets = [0, 96], sizes = [1, 32], strides = [1, 1]} : vector<1x128xf32> to vector<1x32xf32>
    %75 = vector.broadcast %74 : vector<1x32xf32> to vector<2x32xf32>
    %76 = arith.mulf %73, %75 : vector<2x32xf32>
    %77 = arith.addf %72, %76 : vector<2x32xf32>
    %c0_3 = arith.constant 0 : index
    %c0_4 = arith.constant 0 : index
    %78 = vector.load %arg3[%c0_3, %c0_4] : memref<2x128xf32, #tpu.memory_space<vmem>>, vector<2x32xf32>
    tpu.vector_store %arg3[%c0_3, %c0_4], %20 {strides = array<i32>} : memref<2x128xf32, #tpu.memory_space<vmem>>, vector<2x32xf32>,
    %c0_5 = arith.constant 0 : index
    %c32 = arith.constant 32 : index
    %79 = vector.load %arg3[%c0_5, %c32] : memref<2x128xf32, #tpu.memory_space<vmem>>, vector<2x32xf32>
    tpu.vector_store %arg3[%c0_5, %c32], %39 {strides = array<i32>} : memref<2x128xf32, #tpu.memory_space<vmem>>, vector<2x32xf32>,
    %c0_6 = arith.constant 0 : index
    %c64 = arith.constant 64 : index
    %80 = vector.load %arg3[%c0_6, %c64] : memref<2x128xf32, #tpu.memory_space<vmem>>, vector<2x32xf32>
    tpu.vector_store %arg3[%c0_6, %c64], %58 {strides = array<i32>} : memref<2x128xf32, #tpu.memory_space<vmem>>, vector<2x32xf32>,
    %c0_7 = arith.constant 0 : index
    %c96 = arith.constant 96 : index
    %81 = vector.load %arg3[%c0_7, %c96] : memref<2x128xf32, #tpu.memory_space<vmem>>, vector<2x32xf32>
    tpu.vector_store %arg3[%c0_7, %c96], %77 {strides = array<i32>} : memref<2x128xf32, #tpu.memory_space<vmem>>, vector<2x32xf32>,
    return
  }
  func.func @transform_0(%arg0: i32) -> (i32, i32) {
    %c0_i32 = arith.constant 0 : i32
    %c0_i32_0 = arith.constant 0 : i32
    return %arg0, %c0_i32 : i32, i32
  }
  func.func @transform_1(%arg0: i32) -> (i32, i32) {
    %c0_i32 = arith.constant 0 : i32
    %c0_i32_0 = arith.constant 0 : i32
    %c0_i32_1 = arith.constant 0 : i32
    return %c0_i32, %c0_i32_0 : i32, i32
  }
  func.func @transform_2(%arg0: i32) -> (i32, i32) {
    %c0_i32 = arith.constant 0 : i32
    %c0_i32_0 = arith.constant 0 : i32
    return %arg0, %c0_i32 : i32, i32
  }
}

</mosaic_0001>

<llo_original>
// kernel: tpu_custom_call.1
$region0: #{tpu_custom_call.1}
  #allocation0 [shape = 'u32[]', space=smem, size = 0x4, offset = 0x4, fixed_abs, tag = 'smem constant byte address 0x4 - core index']
  #allocation1 [shape = 'u32[72,128]{1,0:T(1,128)}', space=vmem, size = 0x9000, scoped, tag = 'internal scratch']
  %s0 = inlined_call_operand.hbm [shape: f32[2,512], index: 0, kind: input, shape index: {}]
  %s1 = inlined_call_operand.hbm [shape: f32[1,128], index: 1, kind: input, shape index: {}]
  %s2 = inlined_call_operand.hbm [shape: f32[2,128], index: 2, kind: output, shape index: {}]
  %s3 = sld [smem:[#allocation0]]
  $region26: #{tpu_custom_call.1} parent=0
    _
  %s5 = ssub.s32 1, %s3
  %s6 = scalar_select 0, %s5, %s3
  $region1: #{tpu_custom_call.1} parent=0
    #allocation2 [shape = 'u8[4096]{0}', space=vmem, size = 0x1000, scoped, tag = 'input window, operand 0, single buffered']
    #allocation3 [shape = 's32[1]{0}', space=sflag, size = 0x4, scoped, tag = 'scoped memory for tpu_custom_call.1']
    #allocation4 [shape = 's32[1]{0}', space=sflag, size = 0x4, scoped, tag = 'scoped memory for tpu_custom_call.1']
    #allocation5 [shape = 'u8[512]{0}', space=vmem, size = 0x400, scoped, tag = 'input window, operand 1, single buffered']
    #allocation6 [shape = 's32[1]{0}', space=sflag, size = 0x4, scoped, tag = 'scoped memory for tpu_custom_call.1']
    #allocation7 [shape = 'u8[1024]{0}', space=vmem, size = 0x400, scoped, tag = 'output window, operand 0, single buffered']
    %7 = vsyncpa [#allocation3], 0
    %8 = vsyncpa [#allocation6], 0
    %9 = vsyncpa [#allocation4], 0
    // Predicated region
    $region2: #{tpu_custom_call.1} parent=1 // pred_check
      _
    $region3: #{tpu_custom_call.1} parent=1 // pred_check_branch
      %11 = sbr.rel (0) target = $region5
    $region4: #{tpu_custom_call.1} parent=1 // pred_region
      %13 = vsyncadd [#allocation3], 0
      %s15 = sshll.u32 %s0, 4
      %s16 = int_to_ptr.hbm [resolvable:$true] %s15
      %s17 = sshll.u32 [#allocation2], 4
      %s18 = int_to_ptr.vmem [resolvable:$true] %s17
      %20 = dma.hbm_to_vmem [thread:$0]  %s16, 128, %s18, [#allocation3]
    $region5: #{tpu_custom_call.1} parent=1 // pred_fallthru
      _
    // Predicated region
    $region6: #{tpu_custom_call.1} parent=1 // pred_check
      _
    $region7: #{tpu_custom_call.1} parent=1 // pred_check_branch
      %22 = sbr.rel (0) target = $region9
    $region8: #{tpu_custom_call.1} parent=1 // pred_region
      %24 = vsyncadd [#allocation6], 0
      %s26 = sshll.u32 %s1, 4
      %s27 = int_to_ptr.hbm [resolvable:$true] %s26
      %s28 = sshll.u32 [#allocation5], 4
      %s29 = int_to_ptr.vmem [resolvable:$true] %s28
      %31 = dma.hbm_to_vmem [thread:$0]  %s27, 16, %s29, [#allocation6]
    $region9: #{tpu_custom_call.1} parent=1 // pred_fallthru
      _
    // Predicated region
    $region10: #{tpu_custom_call.1} parent=1 // pred_check
      _
    $region11: #{tpu_custom_call.1} parent=1 // pred_check_branch
      %33 = sbr.rel (0) target = $region13
    $region12: #{tpu_custom_call.1} parent=1 // pred_region
      %35 = dma.done [#allocation3], 128
    $region13: #{tpu_custom_call.1} parent=1 // pred_fallthru
      _
    // Predicated region
    $region14: #{tpu_custom_call.1} parent=1 // pred_check
      _
    $region15: #{tpu_custom_call.1} parent=1 // pred_check_branch
      %37 = sbr.rel (0) target = $region17
    $region16: #{tpu_custom_call.1} parent=1 // pred_region
      %39 = dma.done [#allocation6], 16
    $region17: #{tpu_custom_call.1} parent=1 // pred_fallthru
      _
    %v40 = vld [vmem:[#allocation2] sm:$0xff]
    %v41 = vld [vmem:[#allocation5] sm:$0x1]
    %v43 = vperm.slane %v41, 0
    %v45 = vmul.f32 %v40, %v43
    %47 = vrot.lane.b32.xlu0 %v45, 96
    %v48 = vpop.permute.xlu0 %47
    %v50 = vadd.f32 %v45, %v48
    %51 = vrot.lane.b32.xlu0 %v45, 64
    %v52 = vpop.permute.xlu0 %51
    %v54 = vadd.f32 %v50, %v52
    %55 = vrot.lane.b32.xlu0 %v45, 32
    %v56 = vpop.permute.xlu0 %55
    %v58 = vadd.f32 %v54, %v56
    %v60 = vrot.slane %v40, 2
    %v62 = vmul.f32 %v60, %v43
    %63 = vrot.lane.b32.xlu0 %v40, 96
    %v64 = vpop.permute.xlu0 %63
    %v65 = vrot.slane %v64, 2
    %67 = vrot.lane.b32.xlu0 %v43, 96
    %v68 = vpop.permute.xlu0 %67
    %v70 = vmul.f32 %v65, %v68
    %v71 = vadd.f32 %v62, %v70
    %72 = vrot.lane.b32.xlu0 %v40, 64
    %v73 = vpop.permute.xlu0 %72
    %v74 = vrot.slane %v73, 2
    %76 = vrot.lane.b32.xlu0 %v43, 64
    %v77 = vpop.permute.xlu0 %76
    %v79 = vmul.f32 %v74, %v77
    %v80 = vadd.f32 %v71, %v79
    %81 = vrot.lane.b32.xlu0 %v40, 32
    %v82 = vpop.permute.xlu0 %81
    %v83 = vrot.slane %v82, 2
    %85 = vrot.lane.b32.xlu0 %v43, 32
    %v86 = vpop.permute.xlu0 %85
    %v88 = vmul.f32 %v83, %v86
    %v89 = vadd.f32 %v80, %v88
    %v90 = vrot.slane %v40, 4
    %v92 = vmul.f32 %v90, %v43
    %v93 = vrot.slane %v64, 4
    %v95 = vmul.f32 %v93, %v68
    %v96 = vadd.f32 %v92, %v95
    %v97 = vrot.slane %v73, 4
    %v99 = vmul.f32 %v97, %v77
    %v100 = vadd.f32 %v96, %v99
    %v101 = vrot.slane %v82, 4
    %v103 = vmul.f32 %v101, %v86
    %v104 = vadd.f32 %v100, %v103
    %v105 = vrot.slane %v40, 6
    %v107 = vmul.f32 %v105, %v43
    %v108 = vrot.slane %v64, 6
    %v110 = vmul.f32 %v108, %v68
    %v111 = vadd.f32 %v107, %v110
    %v112 = vrot.slane %v73, 6
    %v114 = vmul.f32 %v112, %v77
    %v115 = vadd.f32 %v111, %v114
    %v116 = vrot.slane %v82, 6
    %v118 = vmul.f32 %v116, %v86
    %v119 = vadd.f32 %v115, %v118
    %vm120 = vcmask 254976
    %121 = vst.msk [vmem:[#allocation7] sm:$0x3] %vm120, %v58
    %123 = vst [vmem:[#allocation1] ss:$4 sm:$0xff] %v89
    %v124 = vld.sshfl [vmem:[#allocation1] sm:$0xff pattern:$0x73625140]
    %125 = vrot.lane.b32.xlu0 %v124, 32
    %v126 = vpop.permute.xlu0 %125
    %vm128 = vcmask 517376
    %129 = vst.msk [vmem:[#allocation7] sm:$0x3] %vm128, %v126
    %131 = vst [vmem:[#allocation1] ss:$4 sm:$0xff] %v104
    %v132 = vld.sshfl [vmem:[#allocation1] sm:$0xff pattern:$0x73625140]
    %133 = vrot.lane.b32.xlu0 %v132, 64
    %v134 = vpop.permute.xlu0 %133
    %vm136 = vcmask 779776
    %137 = vst.msk [vmem:[#allocation7] sm:$0x3] %vm136, %v134
    %139 = vst [vmem:[#allocation1] ss:$4 sm:$0xff] %v119
    %v140 = vld.sshfl [vmem:[#allocation1] sm:$0xff pattern:$0x73625140]
    %141 = vrot.lane.b32.xlu0 %v140, 96
    %v142 = vpop.permute.xlu0 %141
    %vm144 = vcmask 1042176
    %145 = vst.msk [vmem:[#allocation7] sm:$0x3] %vm144, %v142
    // Predicated region
    $region18: #{tpu_custom_call.1} parent=1 // pred_check
      _
    $region19: #{tpu_custom_call.1} parent=1 // pred_check_branch
      %147 = sbr.rel (0) target = $region21
    $region20: #{tpu_custom_call.1} parent=1 // pred_region
      %149 = vsyncadd [#allocation4], 0
      %s151 = sshll.u32 [#allocation7], 4
      %s152 = int_to_ptr.vmem [resolvable:$true] %s151
      %s153 = sshll.u32 %s2, 4
      %s154 = int_to_ptr.hbm [resolvable:$true] %s153
      %156 = dma.vmem_to_hbm [thread:$0]  %s152, 32, %s154, [#allocation4]
    $region21: #{tpu_custom_call.1} parent=1 // pred_fallthru
      _
    // Predicated region
    $region22: #{tpu_custom_call.1} parent=1 // pred_check
      _
    $region23: #{tpu_custom_call.1} parent=1 // pred_check_branch
      %158 = sbr.rel (0) target = $region25
    $region24: #{tpu_custom_call.1} parent=1 // pred_region
      %160 = dma.done [#allocation4], 32
    $region25: #{tpu_custom_call.1} parent=1 // pred_fallthru
      _
    %161 = vsyncpa [#allocation3], 1
    %162 = vsyncpa [#allocation6], 1
    %163 = vsyncpa [#allocation4], 1

</llo_original>
